<compile_context>
chip_gen: v7x
topology: tpu7x:2x2x1
jax: 0.10.0
libtpu: 0.0.40
codegen_flags: <defaults>
</compile_context>

<pallas_src>
import jax
import jax.numpy as jnp
from jax.experimental import pallas as pl
from jax.experimental.pallas import tpu as pltpu


def _round_up(x, m):
    return (x + m - 1) // m * m


def _isz(dtype):
    return jnp.dtype(dtype).itemsize


def _svd_lmhead_kernel(h_ref, us_ref, vh_ref, o_ref, hus_ref):
    # hus = h_tile @ (U * S), computed once per M-tile (first vocab tile) and
    # kept resident in VMEM scratch while the vocab tiles stream by.  Correct
    # under a "parallel" M axis because the guard is on the vocab program_id
    # and the vocab axis stays "arbitrary".
    @pl.when(pl.program_id(1) == 0)
    def _():
        hu = jnp.dot(h_ref[...], us_ref[...],
                     preferred_element_type=jnp.float32)
        hus_ref[...] = hu.astype(hus_ref.dtype)

    # Hot path: (tm, R) @ (R, tn) on the MXU for this vocab tile, f32 acc.
    o_ref[...] = jnp.dot(hus_ref[...], vh_ref[...],
                         preferred_element_type=jnp.float32).astype(o_ref.dtype)


def _tpu_info():
    """Return (physical VMEM bytes per core, is_v7x) with safe fallbacks."""
    vmem_cap = None
    try:
        info = pltpu.get_tpu_info()
        vmem_cap = int(info.vmem_capacity_bytes)
    except Exception:
        vmem_cap = None
    kind = ""
    try:
        kind = jax.devices()[0].device_kind.lower()
    except Exception:
        pass
    is_v7 = "v7" in kind
    if vmem_cap is None:
        vmem_cap = (64 << 20) if is_v7 else (128 << 20)
    return vmem_cap, is_v7


def svd_lmhead(h, U, S, Vh, *, tm=512, tn=512,
               weight_dtype=jnp.bfloat16, out_dtype=None):
    """out = ((h @ U) * S) @ Vh.  h: [..., hidden] -> [..., vocab].

    Fast path (default): h / U*S / Vh streamed as bf16, f32 accumulation.
    weight_dtype=jnp.float32 gives bit-faithful f32 math.  out_dtype defaults
    to h.dtype; pass jnp.bfloat16 to halve the logits store (the dominant HBM
    write) on memory-bound generations.
    """
    *lead, K = h.shape
    R = U.shape[-1]
    N = Vh.shape[-1]
    out_dtype = h.dtype if out_dtype is None else out_dtype

    M = 1
    for d in lead:
        M *= d

    # Keep activations / weights in the narrow streaming dtype.  Fold S into U
    # in f32 (one tiny elementwise op) before the cast.
    h2 = h.reshape(M, K).astype(weight_dtype)
    US = (U.astype(jnp.float32) * S.astype(jnp.float32)[None, :]).astype(weight_dtype)
    Vh_c = Vh.astype(weight_dtype)
    hus_dtype = weight_dtype

    vmem_cap, is_v7 = _tpu_info()
    # Generation-aware scoped-VMEM ceiling (leave headroom for Mosaic).
    ceiling = min(int(vmem_cap * 0.85), 112 << 20)
    headroom = 8 << 20

    # Tile clamps: tm multiple of 16 (bf16 sublane packing), tn multiple of 128.
    tm = min(tm, _round_up(M, 16))
    tn = min(tn, _round_up(N, 128))

    # v7x decode case: a single M-tile leaves one of the two TensorCores idle
    # on the "parallel" axis -- split it in two when tm stays >= 16.
    if is_v7 and _round_up(M, tm) // tm == 1 and tm >= 32:
        tm = _round_up(tm // 2, 16)

    def _needed(tm_, tn_, us_bufs, vh_bufs_):
        return (2 * tm_ * K * _isz(h2.dtype)              # h tile (2-buffered)
                + us_bufs * K * R * _isz(US.dtype)         # U*S
                + vh_bufs_ * R * tn_ * _isz(Vh_c.dtype)    # Vh stream
                + 2 * tm_ * tn_ * _isz(out_dtype)          # output tile
                + tm_ * R * _isz(hus_dtype))               # hus scratch

    # Prefer a 3-deep Vh pipeline when it fits; otherwise shrink tiles until
    # the working set fits this generation's VMEM.
    vh_bufs = 3 if _needed(tm, tn, 1, 3) + headroom <= ceiling else 2
    while _needed(tm, tn, 1, vh_bufs) + headroom > ceiling and tn > 128:
        tn = max(128, _round_up(tn // 2, 128))
    while _needed(tm, tn, 1, vh_bufs) + headroom > ceiling and tm > 16:
        tm = max(16, _round_up(tm // 2, 16))

    M_pad = _round_up(M, tm)
    N_pad = _round_up(N, tn)
    if M_pad != M:
        h2 = jnp.pad(h2, ((0, M_pad - M), (0, 0)))
    if N_pad != N:
        Vh_c = jnp.pad(Vh_c, ((0, 0), (0, N_pad - N)))

    grid = (M_pad // tm, N_pad // tn)

    cost = pl.CostEstimate(
        flops=2 * M_pad * K * R + 2 * M_pad * R * N_pad,
        transcendentals=0,
        bytes_accessed=(h2.size * _isz(h2.dtype)
                        + US.size * _isz(US.dtype)
                        + grid[0] * R * N_pad * _isz(Vh_c.dtype)  # Vh restream/M-tile
                        + M_pad * N_pad * _isz(out_dtype)),
    )

    def _build(use_buffered):
        if use_buffered:
            in_specs = [
                pl.BlockSpec((tm, K), lambda i, j: (i, 0)),           # h tile
                pl.BlockSpec((K, R), lambda i, j: (0, 0),
                             pipeline_mode=pl.Buffered(1)),           # U*S (const)
                pl.BlockSpec((R, tn), lambda i, j: (0, j),
                             pipeline_mode=pl.Buffered(vh_bufs)),     # Vh stream
            ]
            us_bufs, vb = 1, vh_bufs
        else:
            in_specs = [
                pl.BlockSpec((tm, K), lambda i, j: (i, 0)),
                pl.BlockSpec((K, R), lambda i, j: (0, 0)),
                pl.BlockSpec((R, tn), lambda i, j: (0, j)),
            ]
            us_bufs, vb = 2, 2
        need = _needed(tm, tn, us_bufs, vb)
        vmem_limit = int(min(max(need + headroom, 32 << 20), ceiling))
        vmem_limit = max(vmem_limit, need + (2 << 20))  # never below the real need
        return pl.pallas_call(
            _svd_lmhead_kernel,
            out_shape=jax.ShapeDtypeStruct((M_pad, N_pad), out_dtype),
            grid_spec=pltpu.PrefetchScalarGridSpec(
                num_scalar_prefetch=0,
                grid=grid,
                in_specs=in_specs,
                out_specs=pl.BlockSpec((tm, tn), lambda i, j: (i, j)),
                scratch_shapes=[pltpu.VMEM((tm, R), hus_dtype)],
            ),
            compiler_params=pltpu.CompilerParams(
                dimension_semantics=("parallel", "arbitrary"),
                vmem_limit_bytes=vmem_limit,
            ),
            cost_estimate=cost,
        )

    try:
        out = _build(True)(h2, US, Vh_c)
    except Exception:
        # Fallback for Pallas builds without BlockSpec pipeline_mode support.
        out = _build(False)(h2, US, Vh_c)

    if M_pad == M and N_pad == N:
        return out.reshape(*lead, N)
    return out[:M, :N].reshape(*lead, N)


if __name__ == "__main__":
    key = jax.random.PRNGKey(0)
    k_h, k_u, k_s, k_v = jax.random.split(key, 4)

    batch, seq, hidden, rank, vocab = 2, 8, 32, 16, 256

    h = jax.random.normal(k_h, (batch, seq, hidden), dtype=jnp.float32)
    U = jax.random.normal(k_u, (hidden, rank), dtype=jnp.float32) * 0.1
    S = jax.random.uniform(k_s, (rank,), dtype=jnp.float32) + 0.5
    Vh = jax.random.normal(k_v, (rank, vocab), dtype=jnp.float32) * 0.1

    ref = ((h @ U) * S) @ Vh

    # Default bandwidth-optimized path (bf16 streams, f32 accumulation).
    out = jax.block_until_ready(svd_lmhead(h, U, S, Vh))
    assert out.shape == (batch, seq, vocab)
    assert out.dtype == jnp.float32
    assert jnp.allclose(out, ref, atol=5e-2, rtol=5e-2)

    # bf16 logits (fast-path output) should match at bf16 precision too.
    out_bf = jax.block_until_ready(
        svd_lmhead(h, U, S, Vh, out_dtype=jnp.bfloat16))
    assert out_bf.dtype == jnp.bfloat16
    assert jnp.allclose(out_bf.astype(jnp.float32), ref, atol=1e-1, rtol=1e-1)

    # Full-f32 path (exact semantics of the PyTorch module).
    out_f32 = jax.block_until_ready(
        svd_lmhead(h, U, S, Vh, weight_dtype=jnp.float32))
    assert jnp.allclose(out_f32, ref, atol=1e-4, rtol=1e-4)

    # Ragged shapes exercise the M / vocab padding + slicing path.
    h_r = jax.random.normal(k_h, (2, 7, hidden), dtype=jnp.float32)
    Vh_r = jax.random.normal(k_v, (rank, 200), dtype=jnp.float32) * 0.1
    out_r = jax.block_until_ready(
        svd_lmhead(h_r, U, S, Vh_r, weight_dtype=jnp.float32))
    ref_r = ((h_r @ U) * S) @ Vh_r
    assert out_r.shape == (2, 7, 200)
    assert jnp.allclose(out_r, ref_r, atol=1e-4, rtol=1e-4)

    print("KERNEL_OK")
</pallas_src>

<mosaic_0001>
module attributes {stable_mosaic.version = 11 : i64} {
  func.func @_svd_lmhead_kernel(%arg0: i32, %arg1: i32, %arg2: memref<16x32xbf16, #tpu.memory_space<vmem>>, %arg3: memref<32x16xbf16, #tpu.memory_space<vmem>>, %arg4: memref<16x256xbf16, #tpu.memory_space<vmem>>, %arg5: memref<16x256xf32, #tpu.memory_space<vmem>>, %arg6: memref<16x16xbf16, #tpu.memory_space<vmem>>) attributes {dimension_semantics = [#tpu.dimension_semantics<parallel>, #tpu.dimension_semantics<arbitrary>], iteration_bounds = array<i64: 1, 1>, scalar_prefetch = 0 : i64, scratch_operands = 1 : i64, tpu.core_type = #tpu.core_type<tc>, window_params = [{transform_indices = @transform_0, window_bounds = array<i64: 16, 32>}, {pipeline_mode = #tpu.pipeline_mode<synchronous>, transform_indices = @transform_1, window_bounds = array<i64: 32, 16>}, {transform_indices = @transform_2, window_bounds = array<i64: 16, 256>}, {transform_indices = @transform_3, window_bounds = array<i64: 16, 256>}]} {
    %c0_i32 = arith.constant 0 : i32
    %0 = arith.cmpi eq, %arg1, %c0_i32 : i32
    %1 = arith.extui %0 : i1 to i32
    %c0_i32_0 = arith.constant 0 : i32
    %2 = arith.cmpi ne, %1, %c0_i32_0 : i32
    scf.if %2 {
      %c0_6 = arith.constant 0 : index
      %c0_7 = arith.constant 0 : index
      %7 = vector.load %arg2[%c0_6, %c0_7] : memref<16x32xbf16, #tpu.memory_space<vmem>>, vector<16x32xbf16>
      %c0_8 = arith.constant 0 : index
      %c0_9 = arith.constant 0 : index
      %8 = vector.load %arg3[%c0_8, %c0_9] : memref<32x16xbf16, #tpu.memory_space<vmem>>, vector<32x16xbf16>
      %cst_10 = arith.constant dense<0.000000e+00> : vector<16x16xf32>
      %9 = tpu.matmul %7, %8, %cst_10 {dimension_numbers = #tpu.dot_dimension_numbers<[1], [0], [0], [1], [0, 0, 1, 1], [], []>} : vector<16x32xbf16>, vector<32x16xbf16>, vector<16x16xf32> -> vector<16x16xf32>
      %10 = arith.truncf %9 : vector<16x16xf32> to vector<16x16xbf16>
      %c0_11 = arith.constant 0 : index
      %c0_12 = arith.constant 0 : index
      %11 = vector.load %arg6[%c0_11, %c0_12] : memref<16x16xbf16, #tpu.memory_space<vmem>>, vector<16x16xbf16>
      tpu.vector_store %arg6[%c0_11, %c0_12], %10 {strides = array<i32>} : memref<16x16xbf16, #tpu.memory_space<vmem>>, vector<16x16xbf16>,
    } else {
    }
    %c0 = arith.constant 0 : index
    %c0_1 = arith.constant 0 : index
    %3 = vector.load %arg6[%c0, %c0_1] : memref<16x16xbf16, #tpu.memory_space<vmem>>, vector<16x16xbf16>
    %c0_2 = arith.constant 0 : index
    %c0_3 = arith.constant 0 : index
    %4 = vector.load %arg4[%c0_2, %c0_3] : memref<16x256xbf16, #tpu.memory_space<vmem>>, vector<16x256xbf16>
    %cst = arith.constant dense<0.000000e+00> : vector<16x256xf32>
    %5 = tpu.matmul %3, %4, %cst {dimension_numbers = #tpu.dot_dimension_numbers<[1], [0], [0], [1], [0, 0, 1, 1], [], []>} : vector<16x16xbf16>, vector<16x256xbf16>, vector<16x256xf32> -> vector<16x256xf32>
    %c0_4 = arith.constant 0 : index
    %c0_5 = arith.constant 0 : index
    %6 = vector.load %arg5[%c0_4, %c0_5] : memref<16x256xf32, #tpu.memory_space<vmem>>, vector<16x256xf32>
    tpu.vector_store %arg5[%c0_4, %c0_5], %5 {strides = array<i32>} : memref<16x256xf32, #tpu.memory_space<vmem>>, vector<16x256xf32>,
    return
  }
  func.func @transform_0(%arg0: i32, %arg1: i32) -> (i32, i32) {
    %c0_i32 = arith.constant 0 : i32
    %c0_i32_0 = arith.constant 0 : i32
    return %arg0, %c0_i32 : i32, i32
  }
  func.func @transform_1(%arg0: i32, %arg1: i32) -> (i32, i32) {
    %c0_i32 = arith.constant 0 : i32
    %c0_i32_0 = arith.constant 0 : i32
    %c0_i32_1 = arith.constant 0 : i32
    return %c0_i32, %c0_i32_0 : i32, i32
  }
  func.func @transform_2(%arg0: i32, %arg1: i32) -> (i32, i32) {
    %c0_i32 = arith.constant 0 : i32
    %c0_i32_0 = arith.constant 0 : i32
    return %c0_i32, %arg1 : i32, i32
  }
  func.func @transform_3(%arg0: i32, %arg1: i32) -> (i32, i32) {
    %c0_i32 = arith.constant 0 : i32
    return %arg0, %arg1 : i32, i32
  }
}

</mosaic_0001>

<llo_original>
// kernel: tpu_custom_call.1
$region0: #{tpu_custom_call.1}
  #allocation0 [shape = 'u32[]', space=smem, size = 0x4, offset = 0x4, fixed_abs, tag = 'smem constant byte address 0x4 - core index']
  #allocation1 [shape = 'u32[144,128]{1,0:T(1,128)}', space=vmem, size = 0x12000, scoped, tag = 'internal scratch']
  #allocation2 [shape = 'bf16[16,16]{1,0:T(16,128)(2,1)}', space=vmem, size = 0x1000, scoped, tag = 'scratch operand']
  %s0 = inlined_call_operand.vmem [shape: bf16[16,32], index: 0, kind: input, shape index: {}]
  %s1 = inlined_call_operand.vmem [shape: bf16[32,16], index: 1, kind: input, shape index: {}]
  %s2 = inlined_call_operand.vmem [shape: bf16[16,256], index: 2, kind: input, shape index: {}]
  %s3 = inlined_call_operand.hbm [shape: f32[16,256], index: 3, kind: output, shape index: {}]
  %s4 = sld [smem:[#allocation0]]
  $region26: #{tpu_custom_call.1} parent=0
    _
  %s6 = ssub.s32 1, %s4
  %s7 = scalar_select 0, %s6, %s4
  $region1: #{tpu_custom_call.1} parent=0
    #allocation3 [shape = 'u8[16384]{0}', space=vmem, size = 0x4000, scoped, tag = 'output window, operand 0, single buffered']
    #allocation4 [shape = 's32[1]{0}', space=sflag, size = 0x4, scoped, tag = 'scoped memory for tpu_custom_call.1']
    %8 = vsyncpa [#allocation4], 0
    // Predicated region
    $region2: #{tpu_custom_call.1} parent=1 // pred_check
      _
    $region3: #{tpu_custom_call.1} parent=1 // pred_check_branch
      %10 = sbr.rel (0) target = $region5
    $region4: #{tpu_custom_call.1} parent=1 // pred_region
      _
    $region5: #{tpu_custom_call.1} parent=1 // pred_fallthru
      _
    // Predicated region
    $region6: #{tpu_custom_call.1} parent=1 // pred_check
      _
    $region7: #{tpu_custom_call.1} parent=1 // pred_check_branch
      %12 = sbr.rel (0) target = $region9
    $region8: #{tpu_custom_call.1} parent=1 // pred_region
      _
    $region9: #{tpu_custom_call.1} parent=1 // pred_fallthru
      _
    // Predicated region
    $region10: #{tpu_custom_call.1} parent=1 // pred_check
      _
    $region11: #{tpu_custom_call.1} parent=1 // pred_check_branch
      %14 = sbr.rel (0) target = $region13
    $region12: #{tpu_custom_call.1} parent=1 // pred_region
      _
    $region13: #{tpu_custom_call.1} parent=1 // pred_fallthru
      _
    %p16 = scmp.eq.s32.totalorder 0, 0
    // Predicated region
    $region14: #{tpu_custom_call.1} parent=1 // pred_check
      %p17 = pneg %p16
    $region15: #{tpu_custom_call.1} parent=1 // pred_check_branch
      %19 = sbr.rel (%p17) target = $region17
    $region16: #{tpu_custom_call.1} parent=1 // pred_region
      %v20 = vld [vmem:[%s0] sm:$0xf]
      %v21 = vld [vmem:[%s0 + $0x4] sm:$0xf]
      %v22 = vld [vmem:[%s1] sm:$0xf]
      %v23 = vld [vmem:[%s1 + $0x4] sm:$0xf]
      %v24 = vld [vmem:[%s1 + $0x8] sm:$0xf]
      %v25 = vld [vmem:[%s1 + $0xc] sm:$0xf]
      %v28 = vunpack.c.l.b16 %v20
      %v29 = vunpack.c.l.b16 %v21
      %v30 = vpack.c.b16 %v29, %v28
      %v35 = vunpack.c.l.b16 %v22
      %v36 = vunpack.c.l.b16 %v23
      %v37 = vunpack.c.l.b16 %v24
      %v38 = vunpack.c.l.b16 %v25
      %v39 = vpack.c.b16 %v36, %v35
      %v40 = vpack.c.b16 %v38, %v37
      %vm43 = vcmask 261120
      %v45 = vsel %vm43, %v30, 0
      %47 = vmatprep.subr.bf16.mxu0 0
      %48 = vmatpush1.bf16.msra.mxu0 %v39
      %49 = vmatprep.subr.bf16.mxu0 0
      %50 = vmatpush1.bf16.msra.mxu0 %v40
      %51 = vmatprep.subr.bf16.mxu0 0
      %52 = vmatpush1.bf16.msra.mxu0 0
      %53 = vmatprep.subr.bf16.mxu0 0
      %54 = vmatpush1.bf16.msra.mxu0 0
      %55 = vmatprep.subr.bf16.mxu0 0
      %56 = vmatpush1.bf16.msra.mxu0 0
      %57 = vmatprep.subr.bf16.mxu0 0
      %58 = vmatpush1.bf16.msra.mxu0 0
      %59 = vmatprep.subr.bf16.mxu0 0
      %60 = vmatpush1.bf16.msra.mxu0 0
      %61 = vmatprep.subr.bf16.mxu0 0
      %62 = vmatpush1.bf16.msra.mxu0 0
      %63 = vmatprep.subr.bf16.mxu0 0
      %64 = vmatpush1.bf16.msra.mxu0 0
      %65 = vmatprep.subr.bf16.mxu0 0
      %66 = vmatpush1.bf16.msra.mxu0 0
      %67 = vmatprep.subr.bf16.mxu0 0
      %68 = vmatpush1.bf16.msra.mxu0 0
      %69 = vmatprep.subr.bf16.mxu0 0
      %70 = vmatpush1.bf16.msra.mxu0 0
      %71 = vmatprep.subr.bf16.mxu0 0
      %72 = vmatpush1.bf16.msra.mxu0 0
      %73 = vmatprep.subr.bf16.mxu0 0
      %74 = vmatpush1.bf16.msra.mxu0 0
      %75 = vmatprep.subr.bf16.mxu0 0
      %76 = vmatpush1.bf16.msra.mxu0 0
      %77 = vmatprep.subr.bf16.mxu0 0
      %78 = vmatpush1.bf16.msra.mxu0 0
      %79 = vmatprep.mubr.bf16.mxu0 0
      %80 = vmatmul.mubr.bf16.gmra.mrb[0].mxu0 %v45
      %v81 = vpop.f32.mrb[0].mxu0
      %v82 = vadd.f32 0.0, %v81
      %v83 = vpop.f32.mrb[0].mxu0
      %v84 = vpop.f32.mrb[0].mxu0
      %v85 = vadd.f32 0.0, %v84
      %v86 = vpop.f32.mrb[0].mxu0
      %87 = vdwg.mxu0
      %v88 = vpack.c.bf16 %v85, %v82
      %vm89 = vcmask 130048
      %90 = vst.msk [vmem:[#allocation2] sm:$0xff] %vm89, %v88
    $region17: #{tpu_custom_call.1} parent=1 // pred_fallthru
      _
    %v91 = vld [vmem:[#allocation2] sm:$0xff]
    %v92 = vld [vmem:[%s2] sm:$0xff]
    %v93 = vld [vmem:[%s2 + $0x8] sm:$0xff]
    %v96 = vunpack.c.l.b16 %v92
    %v97 = vunpack.c.h.b16 %v92
    %v98 = vunpack.c.l.b16 %v93
    %v99 = vunpack.c.h.b16 %v93
    %v100 = vpack.c.b16 %v98, %v96
    %v101 = vpack.c.b16 %v99, %v97
    %vm104 = vcmask 130048
    %v106 = vsel %vm104, %v91, 0
    %108 = vmatprep.subr.bf16.mxu0 %v101
    %109 = vmatpush1.bf16.msra.mxu0 %v100
    %110 = vmatprep.subr.bf16.mxu0 0
    %111 = vmatpush1.bf16.msra.mxu0 0
    %112 = vmatprep.subr.bf16.mxu0 0
    %113 = vmatpush1.bf16.msra.mxu0 0
    %114 = vmatprep.subr.bf16.mxu0 0
    %115 = vmatpush1.bf16.msra.mxu0 0
    %116 = vmatprep.subr.bf16.mxu0 0
    %117 = vmatpush1.bf16.msra.mxu0 0
    %118 = vmatprep.subr.bf16.mxu0 0
    %119 = vmatpush1.bf16.msra.mxu0 0
    %120 = vmatprep.subr.bf16.mxu0 0
    %121 = vmatpush1.bf16.msra.mxu0 0
    %122 = vmatprep.subr.bf16.mxu0 0
    %123 = vmatpush1.bf16.msra.mxu0 0
    %124 = vmatprep.subr.bf16.mxu0 0
    %125 = vmatpush1.bf16.msra.mxu0 0
    %126 = vmatprep.subr.bf16.mxu0 0
    %127 = vmatpush1.bf16.msra.mxu0 0
    %128 = vmatprep.subr.bf16.mxu0 0
    %129 = vmatpush1.bf16.msra.mxu0 0
    %130 = vmatprep.subr.bf16.mxu0 0
    %131 = vmatpush1.bf16.msra.mxu0 0
    %132 = vmatprep.subr.bf16.mxu0 0
    %133 = vmatpush1.bf16.msra.mxu0 0
    %134 = vmatprep.subr.bf16.mxu0 0
    %135 = vmatpush1.bf16.msra.mxu0 0
    %136 = vmatprep.subr.bf16.mxu0 0
    %137 = vmatpush1.bf16.msra.mxu0 0
    %138 = vmatprep.subr.bf16.mxu0 0
    %139 = vmatpush1.bf16.msra.mxu0 0
    %140 = vmatprep.mubr.bf16.mxu0 0
    %141 = vmatmul.mubr.bf16.gmra.mrb[0].mxu0 %v106
    %v142 = vpop.f32.mrb[0].mxu0
    %v143 = vadd.f32 0.0, %v142
    %v144 = vpop.f32.mrb[0].mxu0
    %v145 = vadd.f32 0.0, %v144
    %v146 = vpop.f32.mrb[0].mxu0
    %v147 = vadd.f32 0.0, %v146
    %v148 = vpop.f32.mrb[0].mxu0
    %v149 = vadd.f32 0.0, %v148
    %150 = vdwg.mxu0
    %151 = vst [vmem:[#allocation3] sm:$0xff] %v143
    %152 = vst [vmem:[#allocation3 + $0x8] sm:$0xff] %v145
    %153 = vst [vmem:[#allocation3 + $0x10] sm:$0xff] %v147
    %154 = vst [vmem:[#allocation3 + $0x18] sm:$0xff] %v149
    // Predicated region
    $region18: #{tpu_custom_call.1} parent=1 // pred_check
      _
    $region19: #{tpu_custom_call.1} parent=1 // pred_check_branch
      %156 = sbr.rel (0) target = $region21
    $region20: #{tpu_custom_call.1} parent=1 // pred_region
      %s158 = ssub.s32 512, 512
      %159 = vsyncadd [#allocation4], %s158
      %s160 = sshll.u32 [#allocation3], 4
      %s161 = int_to_ptr.vmem [resolvable:$true] %s160
      %166 = dma.vmem_to_hbm [thread:$0]  %s161, 512, %s3, [#allocation4], 256, 256, 16
    $region21: #{tpu_custom_call.1} parent=1 // pred_fallthru
      _
    // Predicated region
    $region22: #{tpu_custom_call.1} parent=1 // pred_check
      _
    $region23: #{tpu_custom_call.1} parent=1 // pred_check_branch
      %168 = sbr.rel (0) target = $region25
    $region24: #{tpu_custom_call.1} parent=1 // pred_region
      %169 = dma.done [#allocation4], 512
    $region25: #{tpu_custom_call.1} parent=1 // pred_fallthru
      _
    %170 = vsyncpa [#allocation4], 1

</llo_original>
